<compile_context>
chip_gen: v7x
topology: tpu7x:2x2x1
jax: 0.10.0
libtpu: 0.0.40
codegen_flags: <defaults>
</compile_context>

<pallas_src>
import jax
import jax.numpy as jnp
from jax.experimental import pallas as pl
from jax.experimental.pallas import tpu as pltpu


def _make_block_kernel(H, W, Cin, Cmid, Cout, Cse, K, pad, expand, has_skip,
                       off, rpt):
    """One batch element per grid step; activations as (C, H*W) slabs.

    off: dict of static column offsets into the packed weight slab.
    rpt: rows-per-tap (Cmid rounded up to 8) in the tap*mask table.
    """
    HW = H * W

    def kernel(x_ref, wpk_ref, tm_ref, o_ref):
        # ---- load input slab: (1, Cin, HW) -> (Cin, HW), lane axis = HW ------
        x = x_ref[...].reshape(Cin, HW).astype(jnp.float32)

        # ---- expansion 1x1 conv (BN1 scale pre-folded) + shift + swish -------
        if expand:
            w1s = wpk_ref[0:Cmid, off['w1']:off['w1'] + Cin]     # (Cmid, Cin)
            b1 = wpk_ref[0:Cmid, off['b1']:off['b1'] + 1]        # (Cmid, 1)
            h = w1s[:, 0:1] * x[0:1, :]
            for ci in range(1, Cin):
                h = h + w1s[:, ci:ci + 1] * x[ci:ci + 1, :]
            h = h + b1
            h = h * jax.nn.sigmoid(h)                            # swish
        else:
            h = x                                                # Cmid == Cin

        # ---- depthwise KxK conv (stride 1, zero pad) + BN2 shift + swish -----
        # Spatial shift (di, dj) == flat lane shift s = di*W + dj on the HW
        # axis.  Boundary masks and the BN2 scale are pre-multiplied into the
        # tap table on the host, so each tap is: roll (XLU) + mul + add (VPU).
        b2 = wpk_ref[0:Cmid, off['b2']:off['b2'] + 1]            # (Cmid, 1)
        acc = None
        t = 0
        for ki in range(K):
            for kj in range(K):
                s = (ki - pad) * W + (kj - pad)
                # shifted[p] = h[p + s]  (result[i] = x[i - shift])
                shifted = h if s == 0 else pltpu.roll(h, shift=(-s) % HW, axis=1)
                tap = tm_ref[t * rpt:t * rpt + Cmid, :]          # (Cmid, HW)
                term = shifted * tap
                acc = term if acc is None else acc + term
                t += 1
        h2 = acc + b2
        h2 = h2 * jax.nn.sigmoid(h2)                             # swish

        # ---- squeeze-and-excitation (1/HW mean factor folded into wse1) ------
        pooled = jnp.sum(h2, axis=1, keepdims=True)                       # (Cmid, 1)
        wse1 = wpk_ref[0:Cmid, off['wse1']:off['wse1'] + Cse]             # (Cmid, Cse)
        bse1 = wpk_ref[0:1, off['bse1']:off['bse1'] + Cse]                # (1, Cse)
        se = jnp.sum(wse1 * pooled, axis=0, keepdims=True) + bse1         # (1, Cse)
        se = se * jax.nn.sigmoid(se)                                      # swish
        wse2t = wpk_ref[0:Cmid, off['wse2']:off['wse2'] + Cse]            # (Cmid, Cse)
        bse2 = wpk_ref[0:Cmid, off['bse2']:off['bse2'] + 1]               # (Cmid, 1)
        gate = jax.nn.sigmoid(jnp.sum(wse2t * se, axis=1, keepdims=True) + bse2)
        h2 = h2 * gate                                           # broadcast over HW lanes

        # ---- pointwise projection 1x1 conv (BN3 scale pre-folded) + shift ----
        w3s = wpk_ref[0:Cout, off['w3']:off['w3'] + Cmid]        # (Cout, Cmid)
        b3 = wpk_ref[0:Cout, off['b3']:off['b3'] + 1]            # (Cout, 1)
        out = w3s[:, 0:1] * h2[0:1, :]
        for cm in range(1, Cmid):
            out = out + w3s[:, cm:cm + 1] * h2[cm:cm + 1, :]
        out = out + b3

        # ---- residual --------------------------------------------------------
        if has_skip:
            out = out + x                                        # Cin == Cout, stride == 1
        # TODO(synk): drop_connect (training-mode stochastic depth) not implemented.

        o_ref[...] = out.reshape(1, Cout, HW).astype(o_ref.dtype)

    return kernel


def efficientnet_block(x, params, *, kernel_size, stride, expand_ratio, has_skip):
    """x: (N, Cin, H, W) NCHW float32.  params: 13 arrays in 'natural' shapes."""
    assert stride == 1, "stride > 1 not implemented"  # TODO(synk): strided depthwise conv
    (w1, s1, b1, w2, s2, b2, wse1, bse1, wse2, bse2, w3, s3, b3) = params
    N, Cin, H, W = x.shape
    Cmid = w2.shape[-1]
    Cout = w3.shape[-1]
    Cse = wse1.shape[-1]
    assert Cse >= 1, "se_planes must be >= 1 (int(in_planes*se_ratio) was 0)"
    K = kernel_size
    pad = 1 if K == 3 else 2
    expand = (expand_ratio != 1)
    HW = H * W
    if has_skip:
        assert Cin == Cout

    f32 = jnp.float32
    # lane axis = flattened H*W (dense); channel axes live on sublanes.
    x_flat = x.reshape(N, Cin, HW)

    # ---- host-side BN folding: scales into weights, only shifts stay --------
    w1s = jnp.asarray(w1, f32).T * jnp.asarray(s1, f32)[:, None]      # (Cmid, Cin)
    b1c = jnp.asarray(b1, f32).reshape(Cmid, 1)
    b2c = jnp.asarray(b2, f32).reshape(Cmid, 1)
    wse1m = jnp.asarray(wse1, f32) * (1.0 / float(HW))                # mean folded
    bse1r = jnp.asarray(bse1, f32).reshape(1, Cse)
    wse2t = jnp.asarray(wse2, f32).T                                  # (Cmid, Cse)
    bse2c = jnp.asarray(bse2, f32).reshape(Cmid, 1)
    w3s = jnp.asarray(w3, f32).T * jnp.asarray(s3, f32)[:, None]      # (Cout, Cmid)
    b3c = jnp.asarray(b3, f32).reshape(Cout, 1)

    # ---- pack all small weights into ONE (NR, NC) slab (single DMA) ---------
    NR = ((max(Cmid, Cout, Cin, Cse) + 7) // 8) * 8
    pieces = [('w1', w1s), ('b1', b1c), ('b2', b2c),
              ('wse1', wse1m), ('bse1', bse1r), ('wse2', wse2t), ('bse2', bse2c),
              ('w3', w3s), ('b3', b3c)]
    NC = sum(int(a.shape[1]) for _, a in pieces)
    wpk = jnp.zeros((NR, NC), f32)
    off = {}
    col = 0
    for name, arr in pieces:
        r, wdt = arr.shape
        off[name] = col
        wpk = wpk.at[:r, col:col + wdt].set(arr)
        col += wdt

    # ---- pre-multiplied depthwise tap table: tap * s2 * boundary-mask -------
    # Row block t = ki*K + kj holds the (Cmid, HW) constant for lane-shift
    # s = (ki-pad)*W + (kj-pad); the mask zeros lanes whose shifted source
    # would wrap across the image border (same pairing as the kernel loop).
    rpt = ((Cmid + 7) // 8) * 8                        # rows per tap, 8-aligned
    rows_sp = jnp.arange(HW, dtype=jnp.int32) // W
    cols_sp = jnp.arange(HW, dtype=jnp.int32) % W
    w2m = jnp.asarray(w2, f32)                         # (K, K, Cmid)
    s2v = jnp.asarray(s2, f32)
    blocks = []
    for ki in range(K):
        for kj in range(K):
            di, dj = ki - pad, kj - pad
            m = ((rows_sp + di >= 0) & (rows_sp + di < H)
                 & (cols_sp + dj >= 0) & (cols_sp + dj < W)).astype(f32)   # (HW,)
            blk = (w2m[ki, kj, :] * s2v)[:, None] * m[None, :]             # (Cmid, HW)
            if rpt > Cmid:
                blk = jnp.pad(blk, ((0, rpt - Cmid), (0, 0)))
            blocks.append(blk)
    tapmask = jnp.concatenate(blocks, axis=0)          # (K*K*rpt, HW)

    # ---- VMEM working-set estimate (tile-padded, double-buffered) -----------
    def _tile_bytes(r, c):
        return ((r + 7) // 8) * 8 * ((c + 127) // 128) * 128 * 4
    est_bytes = (2 * _tile_bytes(Cin, HW) + 2 * _tile_bytes(Cout, HW)    # I/O blocks
                 + 2 * _tile_bytes(NR, NC) + 2 * _tile_bytes(tapmask.shape[0], HW)
                 + 8 * _tile_bytes(Cmid, HW))                            # live intermediates
    assert est_bytes < 16 * 1024 * 1024, \
        f"estimated VMEM working set {est_bytes} B too large; add spatial tiling"
    # TODO(synk): for real EfficientNet resolutions, tile H into row strips with
    # a (K-1)-row halo, sized for v7x's 64 MiB VMEM, and use MXU matmuls for the
    # 1x1 convs once Cmid >= ~32.

    kernel = _make_block_kernel(H, W, Cin, Cmid, Cout, Cse, K, pad, expand,
                                has_skip, off, rpt)

    # Rough cost hint for XLA scheduling around this small custom call.
    flops_per_img = 2 * HW * ((Cmid * Cin if expand else 0) + K * K * Cmid
                              + Cout * Cmid) + 6 * Cmid * HW + 4 * Cmid * Cse
    trans_per_img = 2 * Cmid * HW + Cse + Cmid
    ce = pl.CostEstimate(
        flops=int(N * flops_per_img),
        transcendentals=int(N * trans_per_img),
        bytes_accessed=int(4 * (N * (Cin + Cout) * HW + wpk.size + tapmask.size)))

    in_specs = [
        pl.BlockSpec((1, Cin, HW), lambda n: (n, 0, 0)),
        pl.BlockSpec(wpk.shape, lambda n: (0, 0)),       # resident: block idx constant
        pl.BlockSpec(tapmask.shape, lambda n: (0, 0)),   # resident: block idx constant
    ]
    out_spec = pl.BlockSpec((1, Cout, HW), lambda n: (n, 0, 0))

    out_flat = pl.pallas_call(
        kernel,
        out_shape=jax.ShapeDtypeStruct((N, Cout, HW), x.dtype),
        grid_spec=pltpu.PrefetchScalarGridSpec(
            num_scalar_prefetch=0,
            grid=(N,),                               # even extent -> both v7x TCs busy
            in_specs=in_specs,
            out_specs=out_spec,
        ),
        compiler_params=pltpu.CompilerParams(
            dimension_semantics=("parallel",),
            vmem_limit_bytes=32 * 1024 * 1024),
        cost_estimate=ce,
    )(x_flat, wpk, tapmask)
    return out_flat.reshape(N, Cout, H, W)


# ----------------------------- pure-JAX reference (NCHW) ------------------------
def ref_block(x, params, *, kernel_size, expand_ratio, has_skip):
    (w1, s1, b1, w2, s2, b2, wse1, bse1, wse2, bse2, w3, s3, b3) = params
    K = kernel_size
    pad = 1 if K == 3 else 2
    h = x
    if expand_ratio != 1:
        h = jnp.einsum('nchw,cd->ndhw', x, w1)
        h = h * s1[None, :, None, None] + b1[None, :, None, None]
        h = h * jax.nn.sigmoid(h)
    N, Cm, H, W = h.shape
    hp = jnp.pad(h, ((0, 0), (0, 0), (pad, pad), (pad, pad)))
    acc = jnp.zeros_like(h)
    for ki in range(K):
        for kj in range(K):
            acc = acc + hp[:, :, ki:ki + H, kj:kj + W] * w2[ki, kj, :][None, :, None, None]
    h = acc * s2[None, :, None, None] + b2[None, :, None, None]
    h = h * jax.nn.sigmoid(h)
    pooled = jnp.mean(h, axis=(2, 3))                      # (N, Cm)
    se = pooled @ wse1 + bse1
    se = se * jax.nn.sigmoid(se)
    se = se @ wse2 + bse2
    gate = jax.nn.sigmoid(se)[:, :, None, None]
    h = h * gate
    out = jnp.einsum('nchw,cd->ndhw', h, w3)
    out = out * s3[None, :, None, None] + b3[None, :, None, None]
    if has_skip:
        out = out + x
    return out


def _bn_fold(gamma, beta, mean, var, eps=1e-5):
    scale = gamma / jnp.sqrt(var + eps)
    shift = beta - mean * scale
    return scale, shift


if __name__ == "__main__":
    # Block(in_planes=4, out_planes=4, kernel_size=3, stride=1,
    #       expand_ratio=2, se_ratio=0.25) -> planes=8, se_planes=1, has_skip=True
    N, H, W = 2, 16, 16
    Cin, Cout = 4, 4
    expand_ratio, se_ratio, K, stride = 2, 0.25, 3, 1
    Cmid = expand_ratio * Cin
    Cse = int(Cin * se_ratio)
    has_skip = (stride == 1 and Cin == Cout)

    key = jax.random.PRNGKey(0)
    ks = jax.random.split(key, 20)
    f32 = jnp.float32

    x = jax.random.normal(ks[0], (N, Cin, H, W), f32)      # NCHW, like the PyTorch module

    # conv1 (1x1, no bias): PyTorch weight (Cmid, Cin, 1, 1) -> (Cin, Cmid)
    w1 = jax.random.normal(ks[1], (Cin, Cmid), f32) * 0.2
    s1, b1 = _bn_fold(1.0 + 0.1 * jax.random.normal(ks[2], (Cmid,), f32),
                      0.1 * jax.random.normal(ks[3], (Cmid,), f32),
                      0.1 * jax.random.normal(ks[4], (Cmid,), f32),
                      0.5 + jax.random.uniform(ks[5], (Cmid,), f32))
    # depthwise conv2: PyTorch weight (Cmid, 1, K, K) -> (K, K, Cmid)
    w2 = jax.random.normal(ks[6], (K, K, Cmid), f32) * 0.2
    s2, b2 = _bn_fold(1.0 + 0.1 * jax.random.normal(ks[7], (Cmid,), f32),
                      0.1 * jax.random.normal(ks[8], (Cmid,), f32),
                      0.1 * jax.random.normal(ks[9], (Cmid,), f32),
                      0.5 + jax.random.uniform(ks[10], (Cmid,), f32))
    # SE: se1 (Cse, Cmid, 1, 1) -> (Cmid, Cse); se2 (Cmid, Cse, 1, 1) -> (Cse, Cmid)
    wse1 = jax.random.normal(ks[11], (Cmid, Cse), f32) * 0.2
    bse1 = 0.1 * jax.random.normal(ks[12], (Cse,), f32)
    wse2 = jax.random.normal(ks[13], (Cse, Cmid), f32) * 0.2
    bse2 = 0.1 * jax.random.normal(ks[14], (Cmid,), f32)
    # conv3 (1x1, no bias): (Cout, Cmid, 1, 1) -> (Cmid, Cout)
    w3 = jax.random.normal(ks[15], (Cmid, Cout), f32) * 0.2
    s3, b3 = _bn_fold(1.0 + 0.1 * jax.random.normal(ks[16], (Cout,), f32),
                      0.1 * jax.random.normal(ks[17], (Cout,), f32),
                      0.1 * jax.random.normal(ks[18], (Cout,), f32),
                      0.5 + jax.random.uniform(ks[19], (Cout,), f32))

    params = (w1, s1, b1, w2, s2, b2, wse1, bse1, wse2, bse2, w3, s3, b3)

    out = efficientnet_block(x, params, kernel_size=K, stride=stride,
                             expand_ratio=expand_ratio, has_skip=has_skip)
    out = jax.block_until_ready(out)

    ref = ref_block(x, params, kernel_size=K,
                    expand_ratio=expand_ratio, has_skip=has_skip)
    assert out.shape == (N, Cout, H, W)
    assert jnp.allclose(out, ref, atol=1e-4, rtol=1e-4), \
        f"max err {jnp.max(jnp.abs(out - ref))}"
    print("KERNEL_OK")
</pallas_src>

<mosaic_0001>
module attributes {stable_mosaic.version = 11 : i64} {
  func.func @kernel(%arg0: i32, %arg1: memref<1x4x256xf32, #tpu.memory_space<vmem>>, %arg2: memref<8x19xf32, #tpu.memory_space<vmem>>, %arg3: memref<72x256xf32, #tpu.memory_space<vmem>>, %arg4: memref<1x4x256xf32, #tpu.memory_space<vmem>>) attributes {dimension_semantics = [#tpu.dimension_semantics<parallel>], iteration_bounds = array<i64: 2>, scalar_prefetch = 0 : i64, scratch_operands = 0 : i64, tpu.core_type = #tpu.core_type<tc>, window_params = [{transform_indices = @transform_0, window_bounds = array<i64: 1, 4, 256>}, {pipeline_mode = #tpu.pipeline_mode<synchronous>, transform_indices = @transform_1, window_bounds = array<i64: 8, 19>}, {pipeline_mode = #tpu.pipeline_mode<synchronous>, transform_indices = @transform_2, window_bounds = array<i64: 72, 256>}, {transform_indices = @transform_3, window_bounds = array<i64: 1, 4, 256>}]} {
    %c0 = arith.constant 0 : index
    %c0_0 = arith.constant 0 : index
    %c0_1 = arith.constant 0 : index
    %0 = vector.load %arg1[%c0, %c0_0, %c0_1] : memref<1x4x256xf32, #tpu.memory_space<vmem>>, vector<1x4x256xf32>
    %1 = vector.shape_cast %0 : vector<1x4x256xf32> to vector<4x256xf32>
    %c0_2 = arith.constant 0 : index
    %c0_3 = arith.constant 0 : index
    %2 = vector.load %arg2[%c0_2, %c0_3] : memref<8x19xf32, #tpu.memory_space<vmem>>, vector<8x4xf32>
    %c0_4 = arith.constant 0 : index
    %c4 = arith.constant 4 : index
    %3 = vector.load %arg2[%c0_4, %c4] : memref<8x19xf32, #tpu.memory_space<vmem>>, vector<8x1xf32>
    %4 = vector.extract_strided_slice %2 {offsets = [0, 0], sizes = [8, 1], strides = [1, 1]} : vector<8x4xf32> to vector<8x1xf32>
    %5 = vector.extract_strided_slice %1 {offsets = [0, 0], sizes = [1, 256], strides = [1, 1]} : vector<4x256xf32> to vector<1x256xf32>
    %6 = vector.broadcast %4 : vector<8x1xf32> to vector<8x256xf32>
    %7 = vector.broadcast %5 : vector<1x256xf32> to vector<8x256xf32>
    %8 = arith.mulf %6, %7 : vector<8x256xf32>
    %9 = vector.extract_strided_slice %2 {offsets = [0, 1], sizes = [8, 1], strides = [1, 1]} : vector<8x4xf32> to vector<8x1xf32>
    %10 = vector.extract_strided_slice %1 {offsets = [1, 0], sizes = [1, 256], strides = [1, 1]} : vector<4x256xf32> to vector<1x256xf32>
    %11 = vector.broadcast %9 : vector<8x1xf32> to vector<8x256xf32>
    %12 = vector.broadcast %10 : vector<1x256xf32> to vector<8x256xf32>
    %13 = arith.mulf %11, %12 : vector<8x256xf32>
    %14 = arith.addf %8, %13 : vector<8x256xf32>
    %15 = vector.extract_strided_slice %2 {offsets = [0, 2], sizes = [8, 1], strides = [1, 1]} : vector<8x4xf32> to vector<8x1xf32>
    %16 = vector.extract_strided_slice %1 {offsets = [2, 0], sizes = [1, 256], strides = [1, 1]} : vector<4x256xf32> to vector<1x256xf32>
    %17 = vector.broadcast %15 : vector<8x1xf32> to vector<8x256xf32>
    %18 = vector.broadcast %16 : vector<1x256xf32> to vector<8x256xf32>
    %19 = arith.mulf %17, %18 : vector<8x256xf32>
    %20 = arith.addf %14, %19 : vector<8x256xf32>
    %21 = vector.extract_strided_slice %2 {offsets = [0, 3], sizes = [8, 1], strides = [1, 1]} : vector<8x4xf32> to vector<8x1xf32>
    %22 = vector.extract_strided_slice %1 {offsets = [3, 0], sizes = [1, 256], strides = [1, 1]} : vector<4x256xf32> to vector<1x256xf32>
    %23 = vector.broadcast %21 : vector<8x1xf32> to vector<8x256xf32>
    %24 = vector.broadcast %22 : vector<1x256xf32> to vector<8x256xf32>
    %25 = arith.mulf %23, %24 : vector<8x256xf32>
    %26 = arith.addf %20, %25 : vector<8x256xf32>
    %27 = vector.broadcast %3 : vector<8x1xf32> to vector<8x256xf32>
    %28 = arith.addf %26, %27 : vector<8x256xf32>
    %29 = arith.negf %28 : vector<8x256xf32>
    %30 = math.exp %29 : vector<8x256xf32>
    %cst = arith.constant 1.000000e+00 : f32
    %31 = vector.broadcast %cst : f32 to vector<8x256xf32>
    %32 = arith.addf %31, %30 : vector<8x256xf32>
    %33 = arith.divf %31, %32 : vector<8x256xf32>
    %34 = arith.mulf %28, %33 : vector<8x256xf32>
    %c0_5 = arith.constant 0 : index
    %c5 = arith.constant 5 : index
    %35 = vector.load %arg2[%c0_5, %c5] : memref<8x19xf32, #tpu.memory_space<vmem>>, vector<8x1xf32>
    %c17_i32 = arith.constant 17 : i32
    %36 = tpu.dynamic_rotate %34 by %c17_i32 dim 1 : vector<8x256xf32>, i32 -> vector<8x256xf32>
    %c0_6 = arith.constant 0 : index
    %c0_7 = arith.constant 0 : index
    %37 = vector.load %arg3[%c0_6, %c0_7] : memref<72x256xf32, #tpu.memory_space<vmem>>, vector<8x256xf32>
    %38 = arith.mulf %36, %37 : vector<8x256xf32>
    %c16_i32 = arith.constant 16 : i32
    %39 = tpu.dynamic_rotate %34 by %c16_i32 dim 1 : vector<8x256xf32>, i32 -> vector<8x256xf32>
    %c8 = arith.constant 8 : index
    %c0_8 = arith.constant 0 : index
    %40 = vector.load %arg3[%c8, %c0_8] : memref<72x256xf32, #tpu.memory_space<vmem>>, vector<8x256xf32>
    %41 = arith.mulf %39, %40 : vector<8x256xf32>
    %42 = arith.addf %38, %41 : vector<8x256xf32>
    %c15_i32 = arith.constant 15 : i32
    %43 = tpu.dynamic_rotate %34 by %c15_i32 dim 1 : vector<8x256xf32>, i32 -> vector<8x256xf32>
    %c16 = arith.constant 16 : index
    %c0_9 = arith.constant 0 : index
    %44 = vector.load %arg3[%c16, %c0_9] : memref<72x256xf32, #tpu.memory_space<vmem>>, vector<8x256xf32>
    %45 = arith.mulf %43, %44 : vector<8x256xf32>
    %46 = arith.addf %42, %45 : vector<8x256xf32>
    %c1_i32 = arith.constant 1 : i32
    %47 = tpu.dynamic_rotate %34 by %c1_i32 dim 1 : vector<8x256xf32>, i32 -> vector<8x256xf32>
    %c24 = arith.constant 24 : index
    %c0_10 = arith.constant 0 : index
    %48 = vector.load %arg3[%c24, %c0_10] : memref<72x256xf32, #tpu.memory_space<vmem>>, vector<8x256xf32>
    %49 = arith.mulf %47, %48 : vector<8x256xf32>
    %50 = arith.addf %46, %49 : vector<8x256xf32>
    %c32 = arith.constant 32 : index
    %c0_11 = arith.constant 0 : index
    %51 = vector.load %arg3[%c32, %c0_11] : memref<72x256xf32, #tpu.memory_space<vmem>>, vector<8x256xf32>
    %52 = arith.mulf %34, %51 : vector<8x256xf32>
    %53 = arith.addf %50, %52 : vector<8x256xf32>
    %c255_i32 = arith.constant 255 : i32
    %54 = tpu.dynamic_rotate %34 by %c255_i32 dim 1 : vector<8x256xf32>, i32 -> vector<8x256xf32>
    %c40 = arith.constant 40 : index
    %c0_12 = arith.constant 0 : index
    %55 = vector.load %arg3[%c40, %c0_12] : memref<72x256xf32, #tpu.memory_space<vmem>>, vector<8x256xf32>
    %56 = arith.mulf %54, %55 : vector<8x256xf32>
    %57 = arith.addf %53, %56 : vector<8x256xf32>
    %c241_i32 = arith.constant 241 : i32
    %58 = tpu.dynamic_rotate %34 by %c241_i32 dim 1 : vector<8x256xf32>, i32 -> vector<8x256xf32>
    %c48 = arith.constant 48 : index
    %c0_13 = arith.constant 0 : index
    %59 = vector.load %arg3[%c48, %c0_13] : memref<72x256xf32, #tpu.memory_space<vmem>>, vector<8x256xf32>
    %60 = arith.mulf %58, %59 : vector<8x256xf32>
    %61 = arith.addf %57, %60 : vector<8x256xf32>
    %c240_i32 = arith.constant 240 : i32
    %62 = tpu.dynamic_rotate %34 by %c240_i32 dim 1 : vector<8x256xf32>, i32 -> vector<8x256xf32>
    %c56 = arith.constant 56 : index
    %c0_14 = arith.constant 0 : index
    %63 = vector.load %arg3[%c56, %c0_14] : memref<72x256xf32, #tpu.memory_space<vmem>>, vector<8x256xf32>
    %64 = arith.mulf %62, %63 : vector<8x256xf32>
    %65 = arith.addf %61, %64 : vector<8x256xf32>
    %c239_i32 = arith.constant 239 : i32
    %66 = tpu.dynamic_rotate %34 by %c239_i32 dim 1 : vector<8x256xf32>, i32 -> vector<8x256xf32>
    %c64 = arith.constant 64 : index
    %c0_15 = arith.constant 0 : index
    %67 = vector.load %arg3[%c64, %c0_15] : memref<72x256xf32, #tpu.memory_space<vmem>>, vector<8x256xf32>
    %68 = arith.mulf %66, %67 : vector<8x256xf32>
    %69 = arith.addf %65, %68 : vector<8x256xf32>
    %70 = vector.broadcast %35 : vector<8x1xf32> to vector<8x256xf32>
    %71 = arith.addf %69, %70 : vector<8x256xf32>
    %72 = arith.negf %71 : vector<8x256xf32>
    %73 = math.exp %72 : vector<8x256xf32>
    %cst_16 = arith.constant 1.000000e+00 : f32
    %74 = vector.broadcast %cst_16 : f32 to vector<8x256xf32>
    %75 = arith.addf %74, %73 : vector<8x256xf32>
    %76 = arith.divf %74, %75 : vector<8x256xf32>
    %77 = arith.mulf %71, %76 : vector<8x256xf32>
    %cst_17 = arith.constant dense<0.000000e+00> : vector<8xf32>
    %78 = vector.multi_reduction <add>, %77, %cst_17 [1] : vector<8x256xf32> to vector<8xf32>
    %79 = vector.shape_cast %78 : vector<8xf32> to vector<8x1xf32>
    %c0_18 = arith.constant 0 : index
    %c6 = arith.constant 6 : index
    %80 = vector.load %arg2[%c0_18, %c6] : memref<8x19xf32, #tpu.memory_space<vmem>>, vector<8x1xf32>
    %c0_19 = arith.constant 0 : index
    %c7 = arith.constant 7 : index
    %81 = vector.load %arg2[%c0_19, %c7] : memref<8x19xf32, #tpu.memory_space<vmem>>, vector<1x1xf32>
    %82 = arith.mulf %80, %79 : vector<8x1xf32>
    %cst_20 = arith.constant dense<0.000000e+00> : vector<1xf32>
    %83 = vector.multi_reduction <add>, %82, %cst_20 [0] : vector<8x1xf32> to vector<1xf32>
    %84 = vector.shape_cast %83 : vector<1xf32> to vector<1x1xf32>
    %85 = arith.addf %84, %81 : vector<1x1xf32>
    %86 = arith.negf %85 : vector<1x1xf32>
    %87 = math.exp %86 : vector<1x1xf32>
    %cst_21 = arith.constant 1.000000e+00 : f32
    %88 = vector.broadcast %cst_21 : f32 to vector<1x1xf32>
    %89 = arith.addf %88, %87 : vector<1x1xf32>
    %90 = arith.divf %88, %89 : vector<1x1xf32>
    %91 = arith.mulf %85, %90 : vector<1x1xf32>
    %c0_22 = arith.constant 0 : index
    %c8_23 = arith.constant 8 : index
    %92 = vector.load %arg2[%c0_22, %c8_23] : memref<8x19xf32, #tpu.memory_space<vmem>>, vector<8x1xf32>
    %c0_24 = arith.constant 0 : index
    %c9 = arith.constant 9 : index
    %93 = vector.load %arg2[%c0_24, %c9] : memref<8x19xf32, #tpu.memory_space<vmem>>, vector<8x1xf32>
    %94 = vector.broadcast %91 : vector<1x1xf32> to vector<8x1xf32>
    %95 = arith.mulf %92, %94 : vector<8x1xf32>
    %cst_25 = arith.constant dense<0.000000e+00> : vector<8xf32>
    %96 = vector.multi_reduction <add>, %95, %cst_25 [1] : vector<8x1xf32> to vector<8xf32>
    %97 = vector.shape_cast %96 : vector<8xf32> to vector<8x1xf32>
    %98 = arith.addf %97, %93 : vector<8x1xf32>
    %99 = arith.negf %98 : vector<8x1xf32>
    %100 = math.exp %99 : vector<8x1xf32>
    %cst_26 = arith.constant 1.000000e+00 : f32
    %101 = vector.broadcast %cst_26 : f32 to vector<8x1xf32>
    %102 = arith.addf %101, %100 : vector<8x1xf32>
    %103 = arith.divf %101, %102 : vector<8x1xf32>
    %104 = vector.broadcast %103 : vector<8x1xf32> to vector<8x256xf32>
    %105 = arith.mulf %77, %104 : vector<8x256xf32>
    %c0_27 = arith.constant 0 : index
    %c10 = arith.constant 10 : index
    %106 = vector.load %arg2[%c0_27, %c10] : memref<8x19xf32, #tpu.memory_space<vmem>>, vector<4x8xf32>
    %c0_28 = arith.constant 0 : index
    %c18 = arith.constant 18 : index
    %107 = vector.load %arg2[%c0_28, %c18] : memref<8x19xf32, #tpu.memory_space<vmem>>, vector<4x1xf32>
    %108 = vector.extract_strided_slice %106 {offsets = [0, 0], sizes = [4, 1], strides = [1, 1]} : vector<4x8xf32> to vector<4x1xf32>
    %109 = vector.extract_strided_slice %105 {offsets = [0, 0], sizes = [1, 256], strides = [1, 1]} : vector<8x256xf32> to vector<1x256xf32>
    %110 = vector.broadcast %108 : vector<4x1xf32> to vector<4x256xf32>
    %111 = vector.broadcast %109 : vector<1x256xf32> to vector<4x256xf32>
    %112 = arith.mulf %110, %111 : vector<4x256xf32>
    %113 = vector.extract_strided_slice %106 {offsets = [0, 1], sizes = [4, 1], strides = [1, 1]} : vector<4x8xf32> to vector<4x1xf32>
    %114 = vector.extract_strided_slice %105 {offsets = [1, 0], sizes = [1, 256], strides = [1, 1]} : vector<8x256xf32> to vector<1x256xf32>
    %115 = vector.broadcast %113 : vector<4x1xf32> to vector<4x256xf32>
    %116 = vector.broadcast %114 : vector<1x256xf32> to vector<4x256xf32>
    %117 = arith.mulf %115, %116 : vector<4x256xf32>
    %118 = arith.addf %112, %117 : vector<4x256xf32>
    %119 = vector.extract_strided_slice %106 {offsets = [0, 2], sizes = [4, 1], strides = [1, 1]} : vector<4x8xf32> to vector<4x1xf32>
    %120 = vector.extract_strided_slice %105 {offsets = [2, 0], sizes = [1, 256], strides = [1, 1]} : vector<8x256xf32> to vector<1x256xf32>
    %121 = vector.broadcast %119 : vector<4x1xf32> to vector<4x256xf32>
    %122 = vector.broadcast %120 : vector<1x256xf32> to vector<4x256xf32>
    %123 = arith.mulf %121, %122 : vector<4x256xf32>
    %124 = arith.addf %118, %123 : vector<4x256xf32>
    %125 = vector.extract_strided_slice %106 {offsets = [0, 3], sizes = [4, 1], strides = [1, 1]} : vector<4x8xf32> to vector<4x1xf32>
    %126 = vector.extract_strided_slice %105 {offsets = [3, 0], sizes = [1, 256], strides = [1, 1]} : vector<8x256xf32> to vector<1x256xf32>
    %127 = vector.broadcast %125 : vector<4x1xf32> to vector<4x256xf32>
    %128 = vector.broadcast %126 : vector<1x256xf32> to vector<4x256xf32>
    %129 = arith.mulf %127, %128 : vector<4x256xf32>
    %130 = arith.addf %124, %129 : vector<4x256xf32>
    %131 = vector.extract_strided_slice %106 {offsets = [0, 4], sizes = [4, 1], strides = [1, 1]} : vector<4x8xf32> to vector<4x1xf32>
    %132 = vector.extract_strided_slice %105 {offsets = [4, 0], sizes = [1, 256], strides = [1, 1]} : vector<8x256xf32> to vector<1x256xf32>
    %133 = vector.broadcast %131 : vector<4x1xf32> to vector<4x256xf32>
    %134 = vector.broadcast %132 : vector<1x256xf32> to vector<4x256xf32>
    %135 = arith.mulf %133, %134 : vector<4x256xf32>
    %136 = arith.addf %130, %135 : vector<4x256xf32>
    %137 = vector.extract_strided_slice %106 {offsets = [0, 5], sizes = [4, 1], strides = [1, 1]} : vector<4x8xf32> to vector<4x1xf32>
    %138 = vector.extract_strided_slice %105 {offsets = [5, 0], sizes = [1, 256], strides = [1, 1]} : vector<8x256xf32> to vector<1x256xf32>
    %139 = vector.broadcast %137 : vector<4x1xf32> to vector<4x256xf32>
    %140 = vector.broadcast %138 : vector<1x256xf32> to vector<4x256xf32>
    %141 = arith.mulf %139, %140 : vector<4x256xf32>
    %142 = arith.addf %136, %141 : vector<4x256xf32>
    %143 = vector.extract_strided_slice %106 {offsets = [0, 6], sizes = [4, 1], strides = [1, 1]} : vector<4x8xf32> to vector<4x1xf32>
    %144 = vector.extract_strided_slice %105 {offsets = [6, 0], sizes = [1, 256], strides = [1, 1]} : vector<8x256xf32> to vector<1x256xf32>
    %145 = vector.broadcast %143 : vector<4x1xf32> to vector<4x256xf32>
    %146 = vector.broadcast %144 : vector<1x256xf32> to vector<4x256xf32>
    %147 = arith.mulf %145, %146 : vector<4x256xf32>
    %148 = arith.addf %142, %147 : vector<4x256xf32>
    %149 = vector.extract_strided_slice %106 {offsets = [0, 7], sizes = [4, 1], strides = [1, 1]} : vector<4x8xf32> to vector<4x1xf32>
    %150 = vector.extract_strided_slice %105 {offsets = [7, 0], sizes = [1, 256], strides = [1, 1]} : vector<8x256xf32> to vector<1x256xf32>
    %151 = vector.broadcast %149 : vector<4x1xf32> to vector<4x256xf32>
    %152 = vector.broadcast %150 : vector<1x256xf32> to vector<4x256xf32>
    %153 = arith.mulf %151, %152 : vector<4x256xf32>
    %154 = arith.addf %148, %153 : vector<4x256xf32>
    %155 = vector.broadcast %107 : vector<4x1xf32> to vector<4x256xf32>
    %156 = arith.addf %154, %155 : vector<4x256xf32>
    %157 = arith.addf %156, %1 : vector<4x256xf32>
    %158 = vector.shape_cast %157 : vector<4x256xf32> to vector<1x4x256xf32>
    %c0_29 = arith.constant 0 : index
    %c0_30 = arith.constant 0 : index
    %c0_31 = arith.constant 0 : index
    %159 = vector.load %arg4[%c0_29, %c0_30, %c0_31] : memref<1x4x256xf32, #tpu.memory_space<vmem>>, vector<1x4x256xf32>
    tpu.vector_store %arg4[%c0_29, %c0_30, %c0_31], %158 {strides = array<i32>} : memref<1x4x256xf32, #tpu.memory_space<vmem>>, vector<1x4x256xf32>,
    return
  }
  func.func @transform_0(%arg0: i32) -> (i32, i32, i32) {
    %c0_i32 = arith.constant 0 : i32
    %c0_i32_0 = arith.constant 0 : i32
    %c0_i32_1 = arith.constant 0 : i32
    return %arg0, %c0_i32, %c0_i32_0 : i32, i32, i32
  }
  func.func @transform_1(%arg0: i32) -> (i32, i32) {
    %c0_i32 = arith.constant 0 : i32
    %c0_i32_0 = arith.constant 0 : i32
    %c0_i32_1 = arith.constant 0 : i32
    return %c0_i32, %c0_i32_0 : i32, i32
  }
  func.func @transform_2(%arg0: i32) -> (i32, i32) {
    %c0_i32 = arith.constant 0 : i32
    %c0_i32_0 = arith.constant 0 : i32
    %c0_i32_1 = arith.constant 0 : i32
    return %c0_i32, %c0_i32_0 : i32, i32
  }
  func.func @transform_3(%arg0: i32) -> (i32, i32, i32) {
    %c0_i32 = arith.constant 0 : i32
    %c0_i32_0 = arith.constant 0 : i32
    %c0_i32_1 = arith.constant 0 : i32
    return %arg0, %c0_i32, %c0_i32_0 : i32, i32, i32
  }
}

</mosaic_0001>

<llo_original>
// kernel: tpu_custom_call.1
$region0: #{tpu_custom_call.1}
  #allocation0 [shape = 'u32[]', space=smem, size = 0x4, offset = 0x4, fixed_abs, tag = 'smem constant byte address 0x4 - core index']
  #allocation1 [shape = 'u32[144,128]{1,0:T(1,128)}', space=vmem, size = 0x12000, scoped, tag = 'internal scratch']
  %s0 = inlined_call_operand.hbm [shape: f32[2,4,256], index: 0, kind: input, shape index: {}]
  %s1 = inlined_call_operand.hbm [shape: f32[8,19], index: 1, kind: input, shape index: {}]
  %s2 = inlined_call_operand.hbm [shape: f32[72,256], index: 2, kind: input, shape index: {}]
  %s3 = inlined_call_operand.hbm [shape: f32[2,4,256], index: 3, kind: output, shape index: {}]
  %s4 = sld [smem:[#allocation0]]
  $region57: #{tpu_custom_call.1} parent=0
    _
  %s6 = ssub.s32 1, %s4
  %s7 = scalar_select 0, %s6, %s4
  $region1: #{tpu_custom_call.1} parent=0
    #allocation2 [shape = 'u8[8192]{0}', space=vmem, size = 0x2000, scoped, tag = 'input window, operand 0']
    #allocation3 [shape = 's32[2]{0}', space=sflag, size = 0x8, scoped, tag = 'scoped memory for tpu_custom_call.1']
    #allocation4 [shape = 's32[2]{0}', space=sflag, size = 0x8, scoped, tag = 'scoped memory for tpu_custom_call.1']
    #allocation5 [shape = 'u8[4096]{0}', space=vmem, size = 0x1000, scoped, tag = 'input window, operand 1, single buffered']
    #allocation6 [shape = 's32[1]{0}', space=sflag, size = 0x4, scoped, tag = 'scoped memory for tpu_custom_call.1']
    #allocation7 [shape = 'u8[73728]{0}', space=vmem, size = 0x12000, scoped, tag = 'input window, operand 2, single buffered']
    #allocation8 [shape = 'u8[8192]{0}', space=vmem, size = 0x2000, scoped, tag = 'output window, operand 0']
    %8 = vsyncpa [#allocation3], 0
    %s9 = scalar_lea.sflag [#allocation3], 1
    %10 = vsyncpa %s9, 0
    %11 = vsyncpa [#allocation6], 0
    %12 = vsyncpa [#allocation4], 0
    %s13 = scalar_lea.sflag [#allocation4], 1
    %14 = vsyncpa %s13, 0
    loop: start=0, step=1, limit=4
    $region2: #{tpu_custom_call.1} parent=1 // loop_pre_header
      _
    $region3: #{tpu_custom_call.1} parent=1 // loop_header
      %s16 = sphi 0, %s20
      %p17 = scmp.ge.s32.totalorder %s16, 4
      %s26 = sphi 0, %s28
      %s29 = sphi 0, %s26
      %s30 = sphi 0, %s29
      %s46 = sphi 0, %s30
      %s50 = sphi 0, %s50
      %s52 = sphi 0, %s50
      %s53 = sphi 0, %s52
      %s67 = sphi 0, %s53
      %s71 = sphi 0, %s71
      %s73 = sphi 0, %s71
      %s74 = sphi 0, %s73
      %s88 = sphi 0, %s74
      %s94 = sphi 0, %s96
      %s97 = sphi 0, %s94
      %s98 = sphi 0, %s97
      %s114 = sphi 0, %s98
    $region4: #{tpu_custom_call.1} parent=1 // loop_header_branch
      %19 = sbr.rel (%p17) target = $region8
    $region5: #{tpu_custom_call.1} parent=1 // loop_body
      %s21 = ssub.s32 %s16, 1
      %s22 = ssub.s32 %s16, 2
      %s23 = sadd.s32 %s16, 1
      %s24 = ssub.s32 %s16, %s23
      %p25 = scmp.eq.s32.totalorder %s24, 0
      %s27 = sadd.s32 %s26, 1
      %s28 = scalar_select %p25, %s26, %s27
      %p31 = pneg %p25
      %p32 = scmp.eq.s32.totalorder %s16, 1
      %p33 = por %p31, %p32
      %p34 = scmp.ne.s32.totalorder %s26, %s29
      %p35 = scmp.eq.s32.totalorder %s16, 0
      %p36 = por %p34, %p35
      %p37 = scmp.ne.s32.totalorder %s26, %s29
      %p38 = scmp.eq.s32.totalorder %s21, 1
      %p39 = por %p37, %p38
      %p40 = scmp.ne.s32.totalorder %s29, %s30
      %p41 = scmp.eq.s32.totalorder %s21, 0
      %p42 = por %p40, %p41
      %p43 = scmp.ne.s32.totalorder %s29, %s30
      %p44 = scmp.eq.s32.totalorder %s22, 1
      %p45 = por %p43, %p44
      %p47 = scmp.ne.s32.totalorder %s30, %s46
      %p48 = scmp.eq.s32.totalorder %s22, 0
      %p49 = por %p47, %p48
      %s51 = sadd.s32 %s50, 1
      %p54 = scmp.eq.s32.totalorder %s16, 1
      %p55 = scmp.ne.s32.totalorder %s50, %s52
      %p56 = scmp.eq.s32.totalorder %s16, 0
      %p57 = por %p55, %p56
      %p58 = scmp.ne.s32.totalorder %s50, %s52
      %p59 = scmp.eq.s32.totalorder %s21, 1
      %p60 = por %p58, %p59
      %p61 = scmp.ne.s32.totalorder %s52, %s53
      %p62 = scmp.eq.s32.totalorder %s21, 0
      %p63 = por %p61, %p62
      %p64 = scmp.ne.s32.totalorder %s52, %s53
      %p65 = scmp.eq.s32.totalorder %s22, 1
      %p66 = por %p64, %p65
      %p68 = scmp.ne.s32.totalorder %s53, %s67
      %p69 = scmp.eq.s32.totalorder %s22, 0
      %p70 = por %p68, %p69
      %s72 = sadd.s32 %s71, 1
      %p75 = scmp.eq.s32.totalorder %s16, 1
      %p76 = scmp.ne.s32.totalorder %s71, %s73
      %p77 = scmp.eq.s32.totalorder %s16, 0
      %p78 = por %p76, %p77
      %p79 = scmp.ne.s32.totalorder %s71, %s73
      %p80 = scmp.eq.s32.totalorder %s21, 1
      %p81 = por %p79, %p80
      %p82 = scmp.ne.s32.totalorder %s73, %s74
      %p83 = scmp.eq.s32.totalorder %s21, 0
      %p84 = por %p82, %p83
      %p85 = scmp.ne.s32.totalorder %s73, %s74
      %p86 = scmp.eq.s32.totalorder %s22, 1
      %p87 = por %p85, %p86
      %p89 = scmp.ne.s32.totalorder %s74, %s88
      %p90 = scmp.eq.s32.totalorder %s22, 0
      %p91 = por %p89, %p90
      %s92 = ssub.s32 %s16, %s23
      %p93 = scmp.eq.s32.totalorder %s92, 0
      %s95 = sadd.s32 %s94, 1
      %s96 = scalar_select %p93, %s94, %s95
      %p99 = pneg %p93
      %p100 = scmp.eq.s32.totalorder %s16, 1
      %p101 = por %p99, %p100
      %p102 = scmp.ne.s32.totalorder %s94, %s97
      %p103 = scmp.eq.s32.totalorder %s16, 0
      %p104 = por %p102, %p103
      %p105 = scmp.ne.s32.totalorder %s94, %s97
      %p106 = scmp.eq.s32.totalorder %s21, 1
      %p107 = por %p105, %p106
      %p108 = scmp.ne.s32.totalorder %s97, %s98
      %p109 = scmp.eq.s32.totalorder %s21, 0
      %p110 = por %p108, %p109
      %p111 = scmp.ne.s32.totalorder %s97, %s98
      %p112 = scmp.eq.s32.totalorder %s22, 1
      %p113 = por %p111, %p112
      %p115 = scmp.ne.s32.totalorder %s98, %s114
      %p116 = scmp.eq.s32.totalorder %s22, 0
      %p117 = por %p115, %p116
      %p118 = scmp.le.s32.totalorder 1, %s16
      %p119 = scmp.lt.s32.totalorder %s16, 3
      %p120 = pnand %p118, %p119
      %p121 = pneg %p120
      // Predicated region
      $region9: #{tpu_custom_call.1} parent=5 // pred_check
        _
      $region10: #{tpu_custom_call.1} parent=5 // pred_check_branch
        %123 = sbr.rel (%p120) target = $region12
      $region11: #{tpu_custom_call.1} parent=5 // pred_region
        %s124 = ssub.s32 %s16, 1
        // Predicated region
        $region13: #{tpu_custom_call.1} parent=11 // pred_check
          %p125 = pneg %p63
        $region14: #{tpu_custom_call.1} parent=11 // pred_check_branch
          %127 = sbr.rel (%p125) target = $region16
        $region15: #{tpu_custom_call.1} parent=11 // pred_region
          %s129 = ssub.s32 128, 128
          %130 = vsyncadd [#allocation6], %s129
          %s132 = sshll.u32 [#allocation5], 4
          %s133 = int_to_ptr.vmem [resolvable:$true] %s132
          %135 = dma.hbm_to_vmem [thread:$0]  %s1, 128, %s133, [#allocation6]
        $region16: #{tpu_custom_call.1} parent=11 // pred_fallthru
          _
        // Predicated region
        $region17: #{tpu_custom_call.1} parent=11 // pred_check
          %p136 = pneg %p84
        $region18: #{tpu_custom_call.1} parent=11 // pred_check_branch
          %138 = sbr.rel (%p136) target = $region20
        $region19: #{tpu_custom_call.1} parent=11 // pred_region
          %s140 = ssub.s32 2304, 2304
          %141 = vsyncadd [#allocation6], %s140
          %s142 = sshll.u32 [#allocation7], 4
          %s143 = int_to_ptr.vmem [resolvable:$true] %s142
          %148 = dma.hbm_to_vmem [thread:$0]  %s2, 2304, %s143, [#allocation6], 256, 256, 16
        $region20: #{tpu_custom_call.1} parent=11 // pred_fallthru
          _
      $region12: #{tpu_custom_call.1} parent=5 // pred_fallthru
        _
      %p149 = scmp.lt.s32.totalorder %s16, 2
      // Predicated region
      $region21: #{tpu_custom_call.1} parent=5 // pred_check
        %p150 = pneg %p149
      $region22: #{tpu_custom_call.1} parent=5 // pred_check_branch
        %152 = sbr.rel (%p150) target = $region24
      $region23: #{tpu_custom_call.1} parent=5 // pred_region
        // Predicated region
        $region25: #{tpu_custom_call.1} parent=23 // pred_check
          %p153 = pneg %p36
        $region26: #{tpu_custom_call.1} parent=23 // pred_check_branch
          %155 = sbr.rel (%p153) target = $region28
        $region27: #{tpu_custom_call.1} parent=23 // pred_region
          %s156 = sand.u32 %s26, 1
          %s157 = scalar_lea.sflag [#allocation3], %s156
          %s158 = sand.u32 %s26, 1
          %s159 = smul.addr %s158, 8
          %s160 = scalar_lea.vmem [#allocation2], %s159
          %s162 = ssub.s32 128, 128
          %163 = vsyncadd %s157, %s162
          %s164 = smul.addr %s16, 2
          %s165 = smul.addr %s164, 64
          %s166 = scalar_lea.hbm %s0, %s165
          %s168 = sshll.u32 %s160, 4
          %s169 = int_to_ptr.vmem [resolvable:$true] %s168
          %171 = dma.hbm_to_vmem [thread:$0]  %s166, 128, %s169, %s157
        $region28: #{tpu_custom_call.1} parent=23 // pred_fallthru
          _
      $region24: #{tpu_custom_call.1} parent=5 // pred_fallthru
        _
      %p172 = scmp.le.s32.totalorder 1, %s16
      %p173 = scmp.lt.s32.totalorder %s16, 3
      %p174 = pnand %p172, %p173
      %p175 = pneg %p174
      // Predicated region
      $region29: #{tpu_custom_call.1} parent=5 // pred_check
        _
      $region30: #{tpu_custom_call.1} parent=5 // pred_check_branch
        %177 = sbr.rel (%p174) target = $region32
      $region31: #{tpu_custom_call.1} parent=5 // pred_region
        %s178 = ssub.s32 %s16, 1
        %s179 = sand.u32 %s29, 1
        %s180 = scalar_lea.sflag [#allocation3], %s179
        %s181 = sand.u32 %s29, 1
        %s182 = smul.addr %s181, 8
        %s183 = scalar_lea.vmem [#allocation2], %s182
        // Predicated region
        $region33: #{tpu_custom_call.1} parent=31 // pred_check
          %p184 = pneg %p42
        $region34: #{tpu_custom_call.1} parent=31 // pred_check_branch
          %186 = sbr.rel (%p184) target = $region36
        $region35: #{tpu_custom_call.1} parent=31 // pred_region
          %187 = dma.done %s180, 128
        $region36: #{tpu_custom_call.1} parent=31 // pred_fallthru
          _
        // Predicated region
        $region37: #{tpu_custom_call.1} parent=31 // pred_check
          %p188 = pneg %p63
        $region38: #{tpu_custom_call.1} parent=31 // pred_check_branch
          %190 = sbr.rel (%p188) target = $region40
        $region39: #{tpu_custom_call.1} parent=31 // pred_region
          %191 = dma.done [#allocation6], 128
        $region40: #{tpu_custom_call.1} parent=31 // pred_fallthru
          _
        // Predicated region
        $region41: #{tpu_custom_call.1} parent=31 // pred_check
          %p192 = pneg %p84
        $region42: #{tpu_custom_call.1} parent=31 // pred_check_branch
          %194 = sbr.rel (%p192) target = $region44
        $region43: #{tpu_custom_call.1} parent=31 // pred_region
          %195 = dma.done [#allocation6], 2304
        $region44: #{tpu_custom_call.1} parent=31 // pred_fallthru
          _
        %s196 = sand.u32 %s29, 1
        %s197 = scalar_lea.sflag [#allocation3], %s196
        %s198 = sand.u32 %s29, 1
        %s199 = smul.addr %s198, 8
        %s200 = scalar_lea.vmem [#allocation2], %s199
        %p201 = pneg %p42
        %p202 = pneg %p39
        %p203 = pneg %p63
        %p204 = pneg %p60
        %p205 = pneg %p84
        %p206 = pneg %p81
        %p207 = pneg %p110
        %p208 = pneg %p107
        %s209 = sand.u32 %s97, 1
        %s210 = scalar_lea.sflag [#allocation4], %s209
        %s211 = sand.u32 %s97, 1
        %s212 = smul.addr %s211, 8
        %s213 = scalar_lea.vmem [#allocation8], %s212
        %v214 = vld [vmem:[%s183] sm:$0xff]
        %v215 = vld [vmem:[#allocation5] sm:$0xff]
        %217 = vset.pattern.permute.xlu0 0
        %218 = vperm.xlu0 %217, %v215
        %v219 = vpop.permute.xlu0 %218
        %v222 = vlaneseq
        %v223 = vshrl.u32 %v222, 7
        %v224 = vsub.s32 0, %v223
        %v225 = vrot.slane %v214, %v224
        %v226 = vlaneseq
        %v227 = vshrl.u32 %v226, 7
        %v228 = vsub.s32 4, %v227
        %v229 = vrot.slane %v214, %v228
        %v232 = vlaneseq
        %v233 = vshrl.u32 %v232, 7
        %v234 = vsub.s32 0, %v233
        %v235 = vrot.slane %v225, %v234
        %v236 = vlaneseq
        %v237 = vshrl.u32 %v236, 7
        %v238 = vsub.s32 0, %v237
        %v239 = vrot.slane %v229, %v238
        %v240 = vmul.f32 %v219, %v235
        %v241 = vmul.f32 %v219, %v239
        %242 = vset.pattern.permute.xlu0 1
        %243 = vperm.xlu0 %242, %v215
        %v244 = vpop.permute.xlu0 %243
        %v246 = vlaneseq
        %v247 = vshrl.u32 %v246, 7
        %v248 = vsub.s32 1, %v247
        %v249 = vrot.slane %v214, %v248
        %v250 = vlaneseq
        %v251 = vshrl.u32 %v250, 7
        %v252 = vsub.s32 5, %v251
        %v253 = vrot.slane %v214, %v252
        %v256 = vlaneseq
        %v257 = vshrl.u32 %v256, 7
        %v258 = vsub.s32 1, %v257
        %v259 = vrot.slane %v249, %v258
        %v260 = vlaneseq
        %v261 = vshrl.u32 %v260, 7
        %v262 = vsub.s32 1, %v261
        %v263 = vrot.slane %v253, %v262
        %v264 = vmul.f32 %v244, %v259
        %v265 = vmul.f32 %v244, %v263
        %v266 = vadd.f32 %v240, %v264
        %v267 = vadd.f32 %v241, %v265
        %268 = vset.pattern.permute.xlu0 2
        %269 = vperm.xlu0 %268, %v215
        %v270 = vpop.permute.xlu0 %269
        %v272 = vlaneseq
        %v273 = vshrl.u32 %v272, 7
        %v274 = vsub.s32 2, %v273
        %v275 = vrot.slane %v214, %v274
        %v276 = vlaneseq
        %v277 = vshrl.u32 %v276, 7
        %v278 = vsub.s32 6, %v277
        %v279 = vrot.slane %v214, %v278
        %v282 = vlaneseq
        %v283 = vshrl.u32 %v282, 7
        %v284 = vsub.s32 2, %v283
        %v285 = vrot.slane %v275, %v284
        %v286 = vlaneseq
        %v287 = vshrl.u32 %v286, 7
        %v288 = vsub.s32 2, %v287
        %v289 = vrot.slane %v279, %v288
        %v290 = vmul.f32 %v270, %v285
        %v291 = vmul.f32 %v270, %v289
        %v292 = vadd.f32 %v266, %v290
        %v293 = vadd.f32 %v267, %v291
        %294 = vset.pattern.permute.xlu0 3
        %295 = vperm.xlu0 %294, %v215
        %v296 = vpop.permute.xlu0 %295
        %v298 = vlaneseq
        %v299 = vshrl.u32 %v298, 7
        %v300 = vsub.s32 3, %v299
        %v301 = vrot.slane %v214, %v300
        %v302 = vlaneseq
        %v303 = vshrl.u32 %v302, 7
        %v304 = vsub.s32 7, %v303
        %v305 = vrot.slane %v214, %v304
        %v308 = vlaneseq
        %v309 = vshrl.u32 %v308, 7
        %v310 = vsub.s32 3, %v309
        %v311 = vrot.slane %v301, %v310
        %v312 = vlaneseq
        %v313 = vshrl.u32 %v312, 7
        %v314 = vsub.s32 3, %v313
        %v315 = vrot.slane %v305, %v314
        %v316 = vmul.f32 %v296, %v311
        %v317 = vmul.f32 %v296, %v315
        %v318 = vadd.f32 %v292, %v316
        %v319 = vadd.f32 %v293, %v317
        %320 = vset.pattern.permute.xlu0 4
        %321 = vperm.xlu0 %320, %v215
        %v322 = vpop.permute.xlu0 %321
        %v324 = vadd.f32 %v318, %v322
        %v325 = vadd.f32 %v319, %v322
        %v326 = vxor.u32 %v324, 2147483648
        %v327 = vxor.u32 %v325, 2147483648
        %v328 = vmul.f32 %v326, 1.442695
        %v329 = vpow.pop %v328
        %v330 = vmul.f32 %v327, 1.442695
        %v331 = vpow.pop %v330
        %v332 = vadd.f32 %v329, 1.0
        %v333 = vadd.f32 %v331, 1.0
        %v334 = vrcp.pop %v332
        %v335 = vmul.f32 1.0, %v334
        %v336 = vrcp.pop %v333
        %v337 = vmul.f32 1.0, %v336
        %v338 = vmul.f32 %v324, %v335
        %v339 = vmul.f32 %v325, %v337
        %340 = vrot.lane.b32.xlu0 %v338, 17
        %v341 = vpop.permute.xlu0 %340
        %342 = vrot.lane.b32.xlu0 %v339, 17
        %v343 = vpop.permute.xlu0 %342
        %v344 = vlaneseq
        %v345 = vand.u32 %v344, 127
        %vm346 = vcmp.lt.s32.totalorder %v345, 17
        %v347 = vsel %vm346, %v341, %v343
        %v348 = vsel %vm346, %v343, %v341
        %v349 = vld [vmem:[#allocation7] sm:$0xff]
        %v350 = vld [vmem:[#allocation7 + $0x8] sm:$0xff]
        %v351 = vmul.f32 %v348, %v349
        %v352 = vmul.f32 %v347, %v350
        %353 = vrot.lane.b32.xlu0 %v338, 16
        %v354 = vpop.permute.xlu0 %353
        %355 = vrot.lane.b32.xlu0 %v339, 16
        %v356 = vpop.permute.xlu0 %355
        %vm357 = vcmp.lt.s32.totalorder %v345, 16
        %v358 = vsel %vm357, %v354, %v356
        %v359 = vsel %vm357, %v356, %v354
        %v360 = vld [vmem:[#allocation7 + $0x10] sm:$0xff]
        %v361 = vld [vmem:[#allocation7 + $0x18] sm:$0xff]
        %v362 = vmul.f32 %v359, %v360
        %v363 = vmul.f32 %v358, %v361
        %v364 = vadd.f32 %v351, %v362
        %v365 = vadd.f32 %v352, %v363
        %366 = vrot.lane.b32.xlu0 %v338, 15
        %v367 = vpop.permute.xlu0 %366
        %368 = vrot.lane.b32.xlu0 %v339, 15
        %v369 = vpop.permute.xlu0 %368
        %vm370 = vcmp.lt.s32.totalorder %v345, 15
        %v371 = vsel %vm370, %v367, %v369
        %v372 = vsel %vm370, %v369, %v367
        %v373 = vld [vmem:[#allocation7 + $0x20] sm:$0xff]
        %v374 = vld [vmem:[#allocation7 + $0x28] sm:$0xff]
        %v375 = vmul.f32 %v372, %v373
        %v376 = vmul.f32 %v371, %v374
        %v377 = vadd.f32 %v364, %v375
        %v378 = vadd.f32 %v365, %v376
        %379 = vrot.lane.b32.xlu0 %v338, 1
        %v380 = vpop.permute.xlu0 %379
        %381 = vrot.lane.b32.xlu0 %v339, 1
        %v382 = vpop.permute.xlu0 %381
        %vm383 = vcmp.lt.s32.totalorder %v345, 1
        %v384 = vsel %vm383, %v380, %v382
        %v385 = vsel %vm383, %v382, %v380
        %v386 = vld [vmem:[#allocation7 + $0x30] sm:$0xff]
        %v387 = vld [vmem:[#allocation7 + $0x38] sm:$0xff]
        %v388 = vmul.f32 %v385, %v386
        %v389 = vmul.f32 %v384, %v387
        %v390 = vadd.f32 %v377, %v388
        %v391 = vadd.f32 %v378, %v389
        %v392 = vld [vmem:[#allocation7 + $0x40] sm:$0xff]
        %v393 = vld [vmem:[#allocation7 + $0x48] sm:$0xff]
        %v394 = vmul.f32 %v338, %v392
        %v395 = vmul.f32 %v339, %v393
        %v396 = vadd.f32 %v390, %v394
        %v397 = vadd.f32 %v391, %v395
        %398 = vrot.lane.b32.xlu0 %v338, 127
        %v399 = vpop.permute.xlu0 %398
        %400 = vrot.lane.b32.xlu0 %v339, 127
        %v401 = vpop.permute.xlu0 %400
        %vm402 = vcmp.lt.s32.totalorder %v345, 127
        %v403 = vsel %vm402, %v399, %v401
        %v404 = vsel %vm402, %v401, %v399
        %v405 = vld [vmem:[#allocation7 + $0x50] sm:$0xff]
        %v406 = vld [vmem:[#allocation7 + $0x58] sm:$0xff]
        %v407 = vmul.f32 %v403, %v405
        %v408 = vmul.f32 %v404, %v406
        %v409 = vadd.f32 %v396, %v407
        %v410 = vadd.f32 %v397, %v408
        %411 = vrot.lane.b32.xlu0 %v338, 113
        %v412 = vpop.permute.xlu0 %411
        %413 = vrot.lane.b32.xlu0 %v339, 113
        %v414 = vpop.permute.xlu0 %413
        %vm415 = vcmp.lt.s32.totalorder %v345, 113
        %v416 = vsel %vm415, %v412, %v414
        %v417 = vsel %vm415, %v414, %v412
        %v418 = vld [vmem:[#allocation7 + $0x60] sm:$0xff]
        %v419 = vld [vmem:[#allocation7 + $0x68] sm:$0xff]
        %v420 = vmul.f32 %v416, %v418
        %v421 = vmul.f32 %v417, %v419
        %v422 = vadd.f32 %v409, %v420
        %v423 = vadd.f32 %v410, %v421
        %424 = vrot.lane.b32.xlu0 %v338, 112
        %v425 = vpop.permute.xlu0 %424
        %426 = vrot.lane.b32.xlu0 %v339, 112
        %v427 = vpop.permute.xlu0 %426
        %vm428 = vcmp.lt.s32.totalorder %v345, 112
        %v429 = vsel %vm428, %v425, %v427
        %v430 = vsel %vm428, %v427, %v425
        %v431 = vld [vmem:[#allocation7 + $0x70] sm:$0xff]
        %v432 = vld [vmem:[#allocation7 + $0x78] sm:$0xff]
        %v433 = vmul.f32 %v429, %v431
        %v434 = vmul.f32 %v430, %v432
        %v435 = vadd.f32 %v422, %v433
        %v436 = vadd.f32 %v423, %v434
        %437 = vrot.lane.b32.xlu0 %v338, 111
        %v438 = vpop.permute.xlu0 %437
        %439 = vrot.lane.b32.xlu0 %v339, 111
        %v440 = vpop.permute.xlu0 %439
        %vm441 = vcmp.lt.s32.totalorder %v345, 111
        %v442 = vsel %vm441, %v438, %v440
        %v443 = vsel %vm441, %v440, %v438
        %v444 = vld [vmem:[#allocation7 + $0x80] sm:$0xff]
        %v445 = vld [vmem:[#allocation7 + $0x88] sm:$0xff]
        %v446 = vmul.f32 %v442, %v444
        %v447 = vmul.f32 %v443, %v445
        %v448 = vadd.f32 %v435, %v446
        %v449 = vadd.f32 %v436, %v447
        %450 = vset.pattern.permute.xlu0 5
        %451 = vperm.xlu0 %450, %v215
        %v452 = vpop.permute.xlu0 %451
        %v454 = vadd.f32 %v448, %v452
        %v455 = vadd.f32 %v449, %v452
        %v456 = vxor.u32 %v454, 2147483648
        %v457 = vxor.u32 %v455, 2147483648
        %v458 = vmul.f32 %v456, 1.442695
        %v459 = vpow.pop %v458
        %v460 = vmul.f32 %v457, 1.442695
        %v461 = vpow.pop %v460
        %v462 = vadd.f32 %v459, 1.0
        %v463 = vadd.f32 %v461, 1.0
        %v464 = vrcp.pop %v462
        %v465 = vmul.f32 1.0, %v464
        %v466 = vrcp.pop %v463
        %v467 = vmul.f32 1.0, %v466
        %v468 = vmul.f32 %v454, %v465
        %v469 = vmul.f32 %v455, %v467
        %v470 = vadd.f32 %v468, %v469
        %471 = vadd.xlane.f32.xlu0 %v470
        %v472 = vpop.xlane.xlu0 %471
        %v473 = vld [vmem:[#allocation5] sm:$0x1]
        %v474 = vmul.f32 %v215, %v472
        %vm475 = vcmask 56368
        %v476 = vsel %vm475, %v474, 0.0
        %v477 = vrot.slane %v476, 4
        %v478 = vadd.f32 %v476, %v477
        %v479 = vrot.slane %v478, 2
        %v480 = vadd.f32 %v478, %v479
        %v481 = vrot.slane %v480, 1
        %v482 = vadd.f32 %v480, %v481
        %484 = vrot.lane.b32.xlu0 %v473, 127
        %v485 = vpop.permute.xlu0 %484
        %v487 = vadd.f32 %v482, %v485
        %v488 = vxor.u32 %v487, 2147483648
        %v489 = vmul.f32 %v488, 1.442695
        %v490 = vpow.pop %v489
        %v491 = vadd.f32 %v490, 1.0
        %v492 = vrcp.pop %v491
        %v493 = vmul.f32 1.0, %v492
        %v494 = vmul.f32 %v487, %v493
        %v495 = vlaneseq
        %v496 = vshrl.u32 %v495, 7
        %v497 = vsub.s32 0, %v496
        %v498 = vrot.slane %v494, %v497
        %500 = vrot.lane.b32.xlu0 %v498, 2
        %v501 = vpop.permute.xlu0 %500
        %v503 = vmul.f32 %v215, %v501
        %v504 = vadd.f32 %v503, 0.0
        %505 = vrot.lane.b32.xlu0 %v215, 127
        %v506 = vpop.permute.xlu0 %505
        %v508 = vadd.f32 %v504, %v506
        %v509 = vxor.u32 %v508, 2147483648
        %v510 = vmul.f32 %v509, 1.442695
        %v511 = vpow.pop %v510
        %v512 = vadd.f32 %v511, 1.0
        %v513 = vrcp.pop %v512
        %v514 = vmul.f32 1.0, %v513
        %516 = vset.pattern.permute.xlu0 8
        %517 = vperm.xlu0 %516, %v514
        %v518 = vpop.permute.xlu0 %517
        %v520 = vmul.f32 %v468, %v518
        %v521 = vmul.f32 %v469, %v518
        %v522 = vld [vmem:[#allocation5] sm:$0xf]
        %524 = vset.pattern.permute.xlu0 10
        %525 = vperm.xlu0 %524, %v522
        %v526 = vpop.permute.xlu0 %525
        %v528 = vlaneseq
        %v529 = vshrl.u32 %v528, 7
        %v530 = vsub.s32 0, %v529
        %v531 = vrot.slane %v520, %v530
        %v532 = vlaneseq
        %v533 = vshrl.u32 %v532, 7
        %v534 = vsub.s32 0, %v533
        %v535 = vrot.slane %v521, %v534
        %v536 = vmul.f32 %v526, %v531
        %v537 = vmul.f32 %v526, %v535
        %538 = vset.pattern.permute.xlu0 11
        %539 = vperm.xlu0 %538, %v522
        %v540 = vpop.permute.xlu0 %539
        %v542 = vlaneseq
        %v543 = vshrl.u32 %v542, 7
        %v544 = vsub.s32 1, %v543
        %v545 = vrot.slane %v520, %v544
        %v546 = vlaneseq
        %v547 = vshrl.u32 %v546, 7
        %v548 = vsub.s32 1, %v547
        %v549 = vrot.slane %v521, %v548
        %v550 = vmul.f32 %v540, %v545
        %v551 = vmul.f32 %v540, %v549
        %v552 = vadd.f32 %v536, %v550
        %v553 = vadd.f32 %v537, %v551
        %554 = vset.pattern.permute.xlu0 12
        %555 = vperm.xlu0 %554, %v522
        %v556 = vpop.permute.xlu0 %555
        %v558 = vlaneseq
        %v559 = vshrl.u32 %v558, 7
        %v560 = vsub.s32 2, %v559
        %v561 = vrot.slane %v520, %v560
        %v562 = vlaneseq
        %v563 = vshrl.u32 %v562, 7
        %v564 = vsub.s32 2, %v563
        %v565 = vrot.slane %v521, %v564
        %v566 = vmul.f32 %v556, %v561
        %v567 = vmul.f32 %v556, %v565
        %v568 = vadd.f32 %v552, %v566
        %v569 = vadd.f32 %v553, %v567
        %570 = vset.pattern.permute.xlu0 13
        %571 = vperm.xlu0 %570, %v522
        %v572 = vpop.permute.xlu0 %571
        %v574 = vlaneseq
        %v575 = vshrl.u32 %v574, 7
        %v576 = vsub.s32 3, %v575
        %v577 = vrot.slane %v520, %v576
        %v578 = vlaneseq
        %v579 = vshrl.u32 %v578, 7
        %v580 = vsub.s32 3, %v579
        %v581 = vrot.slane %v521, %v580
        %v582 = vmul.f32 %v572, %v577
        %v583 = vmul.f32 %v572, %v581
        %v584 = vadd.f32 %v568, %v582
        %v585 = vadd.f32 %v569, %v583
        %586 = vset.pattern.permute.xlu0 14
        %587 = vperm.xlu0 %586, %v522
        %v588 = vpop.permute.xlu0 %587
        %v590 = vlaneseq
        %v591 = vshrl.u32 %v590, 7
        %v592 = vsub.s32 4, %v591
        %v593 = vrot.slane %v520, %v592
        %v594 = vlaneseq
        %v595 = vshrl.u32 %v594, 7
        %v596 = vsub.s32 4, %v595
        %v597 = vrot.slane %v521, %v596
        %v598 = vmul.f32 %v588, %v593
        %v599 = vmul.f32 %v588, %v597
        %v600 = vadd.f32 %v584, %v598
        %v601 = vadd.f32 %v585, %v599
        %602 = vset.pattern.permute.xlu0 15
        %603 = vperm.xlu0 %602, %v522
        %v604 = vpop.permute.xlu0 %603
        %v606 = vlaneseq
        %v607 = vshrl.u32 %v606, 7
        %v608 = vsub.s32 5, %v607
        %v609 = vrot.slane %v520, %v608
        %v610 = vlaneseq
        %v611 = vshrl.u32 %v610, 7
        %v612 = vsub.s32 5, %v611
        %v613 = vrot.slane %v521, %v612
        %v614 = vmul.f32 %v604, %v609
        %v615 = vmul.f32 %v604, %v613
        %v616 = vadd.f32 %v600, %v614
        %v617 = vadd.f32 %v601, %v615
        %618 = vset.pattern.permute.xlu0 16
        %619 = vperm.xlu0 %618, %v522
        %v620 = vpop.permute.xlu0 %619
        %v622 = vlaneseq
        %v623 = vshrl.u32 %v622, 7
        %v624 = vsub.s32 6, %v623
        %v625 = vrot.slane %v520, %v624
        %v626 = vlaneseq
        %v627 = vshrl.u32 %v626, 7
        %v628 = vsub.s32 6, %v627
        %v629 = vrot.slane %v521, %v628
        %v630 = vmul.f32 %v620, %v625
        %v631 = vmul.f32 %v620, %v629
        %v632 = vadd.f32 %v616, %v630
        %v633 = vadd.f32 %v617, %v631
        %634 = vset.pattern.permute.xlu0 17
        %635 = vperm.xlu0 %634, %v522
        %v636 = vpop.permute.xlu0 %635
        %v638 = vlaneseq
        %v639 = vshrl.u32 %v638, 7
        %v640 = vsub.s32 7, %v639
        %v641 = vrot.slane %v520, %v640
        %v642 = vlaneseq
        %v643 = vshrl.u32 %v642, 7
        %v644 = vsub.s32 7, %v643
        %v645 = vrot.slane %v521, %v644
        %v646 = vmul.f32 %v636, %v641
        %v647 = vmul.f32 %v636, %v645
        %v648 = vadd.f32 %v632, %v646
        %v649 = vadd.f32 %v633, %v647
        %650 = vset.pattern.permute.xlu0 18
        %651 = vperm.xlu0 %650, %v522
        %v652 = vpop.permute.xlu0 %651
        %v654 = vadd.f32 %v648, %v652
        %v655 = vadd.f32 %v649, %v652
        %v656 = vcombine.high %v214, %v214
        %v658 = vadd.f32 %v654, %v214
        %v659 = vadd.f32 %v655, %v656
        %v662 = vcombine.low %v658, %v659
        %664 = vst [vmem:[%s213] sm:$0xff] %v662
        %s665 = sand.u32 %s97, 1
        %s666 = scalar_lea.sflag [#allocation4], %s665
        %s667 = sand.u32 %s97, 1
        %s668 = smul.addr %s667, 8
        %s669 = scalar_lea.vmem [#allocation8], %s668
        // Predicated region
        $region45: #{tpu_custom_call.1} parent=31 // pred_check
          %p670 = pneg %p107
        $region46: #{tpu_custom_call.1} parent=31 // pred_check_branch
          %672 = sbr.rel (%p670) target = $region48
        $region47: #{tpu_custom_call.1} parent=31 // pred_region
          %s674 = ssub.s32 128, 128
          %675 = vsyncadd %s666, %s674
          %s676 = smul.addr %s21, 2
          %s677 = smul.addr %s676, 64
          %s678 = scalar_lea.hbm %s3, %s677
          %s680 = sshll.u32 %s669, 4
          %s681 = int_to_ptr.vmem [resolvable:$true] %s680
          %683 = dma.vmem_to_hbm [thread:$0]  %s681, 128, %s678, %s666
        $region48: #{tpu_custom_call.1} parent=31 // pred_fallthru
          _
      $region32: #{tpu_custom_call.1} parent=5 // pred_fallthru
        _
      %p684 = scmp.le.s32.totalorder 2, %s16
      // Predicated region
      $region49: #{tpu_custom_call.1} parent=5 // pred_check
        %p685 = pneg %p684
      $region50: #{tpu_custom_call.1} parent=5 // pred_check_branch
        %687 = sbr.rel (%p685) target = $region52
      $region51: #{tpu_custom_call.1} parent=5 // pred_region
        %s688 = ssub.s32 %s16, 2
        // Predicated region
        $region53: #{tpu_custom_call.1} parent=51 // pred_check
          %p689 = pneg %p113
        $region54: #{tpu_custom_call.1} parent=51 // pred_check_branch
          %691 = sbr.rel (%p689) target = $region56
        $region55: #{tpu_custom_call.1} parent=51 // pred_region
          %s692 = sand.u32 %s98, 1
          %s693 = scalar_lea.sflag [#allocation4], %s692
          %s694 = sand.u32 %s98, 1
          %s695 = smul.addr %s694, 8
          %s696 = scalar_lea.vmem [#allocation8], %s695
          %697 = dma.done %s693, 128
        $region56: #{tpu_custom_call.1} parent=51 // pred_fallthru
          _
      $region52: #{tpu_custom_call.1} parent=5 // pred_fallthru
        _
    $region6: #{tpu_custom_call.1} parent=1 // loop_footer
      %s20 = sadd.s32 1, %s16
    $region7: #{tpu_custom_call.1} parent=1 // loop_footer_branch
      %15 = sbr.rel target = $region3
    $region8: #{tpu_custom_call.1} parent=1 // loop_exit
      _
    %698 = vsyncpa [#allocation3], 1
    %s699 = scalar_lea.sflag [#allocation3], 1
    %700 = vsyncpa %s699, 1
    %701 = vsyncpa [#allocation6], 1
    %702 = vsyncpa [#allocation4], 1
    %s703 = scalar_lea.sflag [#allocation4], 1
    %704 = vsyncpa %s703, 1

</llo_original>
